<compile_context>
chip_gen: v7x
topology: tpu7x:2x2x1
jax: 0.10.0
libtpu: 0.0.40
codegen_flags: <defaults>
</compile_context>

<pallas_src>
import jax
import jax.numpy as jnp
from jax.experimental import pallas as pl
from jax.experimental.pallas import tpu as pltpu


# --------------------------------------------------------------------------------------
# Kernels
# --------------------------------------------------------------------------------------
def _ffn_resident_kernel(x_ref, w1_ref, w2_ref, o_ref):
    # x_ref : (TM, D)    bf16 token tile
    # w1_ref: (D, 2H)    fused bf16 up-projection [silu-half | gate-half] (resident in VMEM)
    # w2_ref: (H, D)     bf16 down-projection (resident in VMEM)
    # o_ref : (TM, D)    output tile
    x = x_ref[...]
    h = jnp.dot(x, w1_ref[...], preferred_element_type=jnp.float32)        # (TM, 2H) f32
    hid = w2_ref.shape[0]
    a = h[:, :hid]                                                          # 128-aligned slice
    b = h[:, hid:]
    g = (a * jax.nn.sigmoid(a)) * b                                         # SiLU(a) * b, f32
    o_ref[...] = jnp.dot(g.astype(w2_ref.dtype), w2_ref[...],
                         preferred_element_type=jnp.float32).astype(o_ref.dtype)


def _ffn_tiled_kernel(x_ref, wa_ref, wb_ref, w2_ref, o_ref, acc_ref):
    # x_ref  : (TM, D)   bf16 token tile (same block revisited across the hidden axis)
    # wa_ref : (D, TH)   bf16 panel of the SiLU half of w1
    # wb_ref : (D, TH)   bf16 panel of the gate half of w1
    # w2_ref : (TH, D)   bf16 panel of w2
    # o_ref  : (TM, D)   output tile, written on the last hidden step
    # acc_ref: (TM, D)   f32 accumulator, resident across the hidden (reduction) axis
    j = pl.program_id(1)

    @pl.when(j == 0)
    def _():
        acc_ref[...] = jnp.zeros_like(acc_ref)

    x = x_ref[...]
    a = jnp.dot(x, wa_ref[...], preferred_element_type=jnp.float32)         # (TM, TH) f32
    b = jnp.dot(x, wb_ref[...], preferred_element_type=jnp.float32)         # (TM, TH) f32
    g = (a * jax.nn.sigmoid(a)) * b                                          # SiLU(a) * b, f32
    acc_ref[...] += jnp.dot(g.astype(w2_ref.dtype), w2_ref[...],
                            preferred_element_type=jnp.float32)

    @pl.when(j == pl.num_programs(1) - 1)
    def _():
        o_ref[...] = acc_ref[...].astype(o_ref.dtype)


# --------------------------------------------------------------------------------------
# Helpers
# --------------------------------------------------------------------------------------
def _round_up(x, m):
    return (x + m - 1) // m * m


def _divisor_tile(h, target):
    """Largest t <= target with t % 128 == 0 and h % t == 0, or None."""
    best = None
    t = 128
    while t <= min(h, target):
        if h % t == 0:
            best = t
        t += 128
    return best


def _tpu_generation_params():
    """(vmem_capacity, vmem_budget_for_this_kernel, tm_default, th_default, ncores_hint)."""
    vmem_cap = 64 << 20  # conservative (v7x-sized) default if the query fails
    try:
        info = pltpu.get_tpu_info()
        vmem_cap = int(getattr(info, "vmem_capacity_bytes", vmem_cap))
    except Exception:
        pass
    kind = ""
    try:
        kind = jax.devices()[0].device_kind.lower()
    except Exception:
        pass
    is_v7 = ("v7" in kind) or ("7x" in kind) or vmem_cap <= (64 << 20)
    budget = vmem_cap * 4 // 5  # ~80% of physical VMEM (~51 MiB v7x, ~102 MiB v5e/v6e)
    if is_v7:
        # 64 MiB VMEM, 2 TensorCores/chip, 3.2 TB/s HBM: tm~512 clears the ~310 FLOP/byte knee.
        return vmem_cap, budget, 512, 256, 2
    # v5e / v6e: 128 MiB VMEM, 1 TC: big token tile (knee ~240 / ~650 FLOP/byte).
    return vmem_cap, budget, 1024, 512, 1


def prepare_ffn_weights(w1, w2, compute_dtype=jnp.bfloat16):
    """One-time weight layout/dtype prep (do NOT run per forward call).

    w1: (2H, D) torch nn.Linear layout, w2: (D, H) torch layout.
    Returns fused, pre-transposed w1t (D, 2H) = [silu-half | gate-half] and w2t (H, D).
    """
    w1t = w1.T.astype(compute_dtype)   # columns [0:H) = SiLU branch, [H:2H) = gate branch
    w2t = w2.T.astype(compute_dtype)
    return w1t, w2t


# --------------------------------------------------------------------------------------
# Wrapper
# --------------------------------------------------------------------------------------
def feedforward_pallas(x, w1t, w2t, *, tm=None, th=None, weight_resident=None):
    """x: (B, S, D); w1t: (D, 2H); w2t: (H, D) — weights from prepare_ffn_weights."""
    B, S, D = x.shape
    Dw, two_h = w1t.shape
    H = two_h // 2
    assert Dw == D and w2t.shape == (H, D)

    out_dtype = x.dtype
    compute_dtype = w1t.dtype
    xbytes = jnp.dtype(compute_dtype).itemsize
    obytes = jnp.dtype(out_dtype).itemsize
    wbytes = xbytes
    headroom = 4 << 20

    vmem_cap, budget, tm_default, th_default, ncores = _tpu_generation_params()

    # ---- token tiling ------------------------------------------------------------------
    M = B * S
    tm_ = tm if tm is not None else tm_default
    tm_ = max(8, min(_round_up(tm_, 8), _round_up(M, 8)))
    if tm is None:
        # v7x has 2 TensorCores: keep at least `ncores` blocks on the "parallel" token axis.
        while ncores >= 2 and _round_up(M, tm_) // tm_ < ncores and tm_ > 8:
            tm_ = max(8, _round_up(tm_ // 2, 8))

    # ---- VMEM footprint models (double-buffered pipeline inputs/outputs) ---------------
    def _resident_vmem(tm_i):
        return (2 * tm_i * D * xbytes + 2 * tm_i * D * obytes
                + 2 * 3 * D * H * wbytes           # w1t (D,2H) + w2t (H,D)
                + 3 * tm_i * H * 4                 # (TM,2H) f32 up-proj + (TM,H) gate
                + headroom)

    def _tiled_vmem(tm_i, th_i):
        return (2 * tm_i * D * xbytes + 2 * tm_i * D * obytes
                + tm_i * D * 4                     # f32 accumulator scratch
                + 2 * 3 * D * th_i * wbytes        # wa/wb/w2 panels
                + 3 * tm_i * th_i * 4              # a/b/g intermediates
                + headroom)

    # ---- resident vs streaming decision -------------------------------------------------
    resident = weight_resident
    if resident is None:
        t = tm_
        if tm is None:
            while _resident_vmem(t) > budget and t > 64:
                t = max(64, _round_up(t // 2, 8))
        if _resident_vmem(t) <= budget:
            resident, tm_ = True, t
        else:
            resident = False

    if resident:
        th_ = H
        needed = _resident_vmem(tm_)
    else:
        if th is not None:
            th_ = th
            assert H % th_ == 0, "th must divide the hidden dim"
        else:
            th_ = _divisor_tile(H, th_default) or H
            while _tiled_vmem(tm_, th_) > budget:
                smaller = _divisor_tile(H, th_ // 2) if th_ > 128 else None
                if smaller is not None and smaller < th_:
                    th_ = smaller
                elif tm is None and tm_ > 64:
                    tm_ = max(64, _round_up(tm_ // 2, 8))
                else:
                    break
        needed = _tiled_vmem(tm_, th_)

    m_pad = _round_up(M, tm_)
    n_m = m_pad // tm_

    # ---- activation prep ----------------------------------------------------------------
    x2d = x.reshape(M, D)
    if x2d.dtype != compute_dtype:
        # TODO(synk): keep activations bf16 upstream to avoid this extra full-HBM cast pass.
        x2d = x2d.astype(compute_dtype)
    if m_pad != M:
        x2d = jnp.pad(x2d, ((0, m_pad - M), (0, 0)))

    # ---- VMEM limit: >= actual requirement, <= physical capacity -------------------------
    vmem_limit = int(min(max(needed, 32 << 20), vmem_cap - (2 << 20)))

    # ---- advisory cost (includes weight re-streaming on the tiled path) ------------------
    weight_hbm = 3 * D * H * wbytes
    cost = pl.CostEstimate(
        flops=6 * M * D * H,                 # 2*M*D*2H + 2*M*H*D
        transcendentals=M * H,               # sigmoid inside SiLU
        bytes_accessed=M * D * xbytes + M * D * obytes
        + (weight_hbm if resident else n_m * weight_hbm),
    )

    if resident:
        out = pl.pallas_call(
            _ffn_resident_kernel,
            out_shape=jax.ShapeDtypeStruct((m_pad, D), out_dtype),
            grid_spec=pltpu.PrefetchScalarGridSpec(
                num_scalar_prefetch=0,
                grid=(n_m,),
                in_specs=[
                    pl.BlockSpec((tm_, D), lambda i: (i, 0)),      # x tile
                    pl.BlockSpec((D, 2 * H), lambda i: (0, 0)),    # fused w1 (DMA'd once)
                    pl.BlockSpec((H, D), lambda i: (0, 0)),        # w2      (DMA'd once)
                ],
                out_specs=pl.BlockSpec((tm_, D), lambda i: (i, 0)),
            ),
            compiler_params=pltpu.CompilerParams(
                dimension_semantics=("parallel",),
                vmem_limit_bytes=vmem_limit,
            ),
            cost_estimate=cost,
        )(x2d, w1t, w2t)
    else:
        n_h = H // th_
        out = pl.pallas_call(
            _ffn_tiled_kernel,
            out_shape=jax.ShapeDtypeStruct((m_pad, D), out_dtype),
            grid_spec=pltpu.PrefetchScalarGridSpec(
                num_scalar_prefetch=0,
                grid=(n_m, n_h),
                in_specs=[
                    pl.BlockSpec((tm_, D), lambda i, j: (i, 0)),          # x tile (revisited)
                    pl.BlockSpec((D, th_), lambda i, j: (0, j)),          # SiLU half panel
                    pl.BlockSpec((D, th_), lambda i, j: (0, j + n_h)),    # gate half panel
                    pl.BlockSpec((th_, D), lambda i, j: (j, 0)),          # w2 panel
                ],
                out_specs=pl.BlockSpec((tm_, D), lambda i, j: (i, 0)),
                scratch_shapes=[pltpu.VMEM((tm_, D), jnp.float32)],
            ),
            compiler_params=pltpu.CompilerParams(
                dimension_semantics=("parallel", "arbitrary"),
                vmem_limit_bytes=vmem_limit,
            ),
            cost_estimate=cost,
        )(x2d, w1t, w1t, w2t)

    return out[:M].reshape(B, S, D)


# --------------------------------------------------------------------------------------
# Pure-JAX reference (mirrors the PyTorch module, f32)
# --------------------------------------------------------------------------------------
def feedforward_ref(x, w1, w2):
    h = jnp.einsum("bsd,ed->bse", x, w1)          # Linear w1 (no bias)
    a, b = jnp.split(h, 2, axis=-1)
    g = jax.nn.silu(a) * b
    return jnp.einsum("bsh,dh->bsd", g, w2)       # Linear w2 (no bias)


if __name__ == "__main__":
    # Module hyper-params (small): dim=128 (lane-dense), requested hidden_dim=100,
    # multiple_of=256 -> effective hidden_dim = 256 (matches the PyTorch rounding).
    dim = 128
    multiple_of = 256
    hidden_req = 100
    hidden_dim = multiple_of * ((hidden_req + multiple_of - 1) // multiple_of)  # 256
    B, S = 2, 8

    key = jax.random.PRNGKey(0)
    kx, k1, k2 = jax.random.split(key, 3)
    x = jax.random.normal(kx, (B, S, dim), dtype=jnp.float32)
    # nn.Linear weight shapes (out_features, in_features)
    w1 = jax.random.normal(k1, (2 * hidden_dim, dim), dtype=jnp.float32) * 0.02
    w2 = jax.random.normal(k2, (dim, hidden_dim), dtype=jnp.float32) * 0.02

    w1t, w2t = prepare_ffn_weights(w1, w2)        # one-time layout/dtype prep
    ref = feedforward_ref(x, w1, w2)

    # 1) Auto path (weight-resident at these shapes on every current TPU generation).
    out = jax.block_until_ready(feedforward_pallas(x, w1t, w2t))
    assert out.shape == (B, S, dim)
    assert jnp.allclose(out, ref, atol=2e-2, rtol=2e-2), "resident path mismatch vs reference"

    # 2) Force the streaming (hidden-tiled) path so the big-weight code path is exercised too.
    out_t = jax.block_until_ready(
        feedforward_pallas(x, w1t, w2t, th=128, weight_resident=False))
    assert jnp.allclose(out_t, ref, atol=2e-2, rtol=2e-2), "tiled path mismatch vs reference"

    print("KERNEL_OK")
</pallas_src>

<mosaic_0001>
module attributes {stable_mosaic.version = 11 : i64} {
  func.func @_ffn_resident_kernel(%arg0: i32, %arg1: memref<8x128xbf16, #tpu.memory_space<vmem>>, %arg2: memref<128x512xbf16, #tpu.memory_space<vmem>>, %arg3: memref<256x128xbf16, #tpu.memory_space<vmem>>, %arg4: memref<8x128xf32, #tpu.memory_space<vmem>>) attributes {dimension_semantics = [#tpu.dimension_semantics<parallel>], iteration_bounds = array<i64: 2>, scalar_prefetch = 0 : i64, scratch_operands = 0 : i64, tpu.core_type = #tpu.core_type<tc>, window_params = [{transform_indices = @transform_0, window_bounds = array<i64: 8, 128>}, {pipeline_mode = #tpu.pipeline_mode<synchronous>, transform_indices = @transform_1, window_bounds = array<i64: 128, 512>}, {pipeline_mode = #tpu.pipeline_mode<synchronous>, transform_indices = @transform_2, window_bounds = array<i64: 256, 128>}, {transform_indices = @transform_3, window_bounds = array<i64: 8, 128>}]} {
    %c0 = arith.constant 0 : index
    %c0_0 = arith.constant 0 : index
    %0 = vector.load %arg1[%c0, %c0_0] : memref<8x128xbf16, #tpu.memory_space<vmem>>, vector<8x128xbf16>
    %c0_1 = arith.constant 0 : index
    %c0_2 = arith.constant 0 : index
    %1 = vector.load %arg2[%c0_1, %c0_2] : memref<128x512xbf16, #tpu.memory_space<vmem>>, vector<128x512xbf16>
    %cst = arith.constant dense<0.000000e+00> : vector<8x512xf32>
    %2 = tpu.matmul %0, %1, %cst {dimension_numbers = #tpu.dot_dimension_numbers<[1], [0], [0], [1], [0, 0, 1, 1], [], []>} : vector<8x128xbf16>, vector<128x512xbf16>, vector<8x512xf32> -> vector<8x512xf32>
    %3 = vector.extract_strided_slice %2 {offsets = [0, 0], sizes = [8, 256], strides = [1, 1]} : vector<8x512xf32> to vector<8x256xf32>
    %4 = vector.extract_strided_slice %2 {offsets = [0, 256], sizes = [8, 256], strides = [1, 1]} : vector<8x512xf32> to vector<8x256xf32>
    %5 = arith.negf %3 : vector<8x256xf32>
    %6 = math.exp %5 : vector<8x256xf32>
    %cst_3 = arith.constant 1.000000e+00 : f32
    %7 = vector.broadcast %cst_3 : f32 to vector<8x256xf32>
    %8 = arith.addf %7, %6 : vector<8x256xf32>
    %9 = arith.divf %7, %8 : vector<8x256xf32>
    %10 = arith.mulf %3, %9 : vector<8x256xf32>
    %11 = arith.mulf %10, %4 : vector<8x256xf32>
    %12 = arith.truncf %11 : vector<8x256xf32> to vector<8x256xbf16>
    %c0_4 = arith.constant 0 : index
    %c0_5 = arith.constant 0 : index
    %13 = vector.load %arg3[%c0_4, %c0_5] : memref<256x128xbf16, #tpu.memory_space<vmem>>, vector<256x128xbf16>
    %cst_6 = arith.constant dense<0.000000e+00> : vector<8x128xf32>
    %14 = tpu.matmul %12, %13, %cst_6 {dimension_numbers = #tpu.dot_dimension_numbers<[1], [0], [0], [1], [0, 0, 1, 1], [], []>} : vector<8x256xbf16>, vector<256x128xbf16>, vector<8x128xf32> -> vector<8x128xf32>
    %c0_7 = arith.constant 0 : index
    %c0_8 = arith.constant 0 : index
    %15 = vector.load %arg4[%c0_7, %c0_8] : memref<8x128xf32, #tpu.memory_space<vmem>>, vector<8x128xf32>
    tpu.vector_store %arg4[%c0_7, %c0_8], %14 {strides = array<i32>} : memref<8x128xf32, #tpu.memory_space<vmem>>, vector<8x128xf32>,
    return
  }
  func.func @transform_0(%arg0: i32) -> (i32, i32) {
    %c0_i32 = arith.constant 0 : i32
    %c0_i32_0 = arith.constant 0 : i32
    return %arg0, %c0_i32 : i32, i32
  }
  func.func @transform_1(%arg0: i32) -> (i32, i32) {
    %c0_i32 = arith.constant 0 : i32
    %c0_i32_0 = arith.constant 0 : i32
    %c0_i32_1 = arith.constant 0 : i32
    return %c0_i32, %c0_i32_0 : i32, i32
  }
  func.func @transform_2(%arg0: i32) -> (i32, i32) {
    %c0_i32 = arith.constant 0 : i32
    %c0_i32_0 = arith.constant 0 : i32
    %c0_i32_1 = arith.constant 0 : i32
    return %c0_i32, %c0_i32_0 : i32, i32
  }
  func.func @transform_3(%arg0: i32) -> (i32, i32) {
    %c0_i32 = arith.constant 0 : i32
    %c0_i32_0 = arith.constant 0 : i32
    return %arg0, %c0_i32 : i32, i32
  }
}

</mosaic_0001>

<llo_original>
// kernel: tpu_custom_call.1
$region0: #{tpu_custom_call.1}
  #allocation0 [shape = 'u32[]', space=smem, size = 0x4, offset = 0x4, fixed_abs, tag = 'smem constant byte address 0x4 - core index']
  #allocation1 [shape = 'u32[144,128]{1,0:T(1,128)}', space=vmem, size = 0x12000, scoped, tag = 'internal scratch']
  %s0 = inlined_call_operand.hbm [shape: bf16[16,128], index: 0, kind: input, shape index: {}]
  %s1 = inlined_call_operand.hbm [shape: bf16[128,512], index: 1, kind: input, shape index: {}]
  %s2 = inlined_call_operand.hbm [shape: bf16[256,128], index: 2, kind: input, shape index: {}]
  %s3 = inlined_call_operand.hbm [shape: f32[16,128], index: 3, kind: output, shape index: {}]
  %s4 = sld [smem:[#allocation0]]
  $region57: #{tpu_custom_call.1} parent=0
    _
  %s6 = ssub.s32 1, %s4
  %s7 = scalar_select 0, %s6, %s4
  $region1: #{tpu_custom_call.1} parent=0
    #allocation2 [shape = 'u8[4096]{0}', space=vmem, size = 0x1000, scoped, tag = 'input window, operand 0']
    #allocation3 [shape = 's32[2]{0}', space=sflag, size = 0x8, scoped, tag = 'scoped memory for tpu_custom_call.1']
    #allocation4 [shape = 's32[2]{0}', space=sflag, size = 0x8, scoped, tag = 'scoped memory for tpu_custom_call.1']
    #allocation5 [shape = 'u8[131072]{0}', space=vmem, size = 0x20000, scoped, tag = 'input window, operand 1, single buffered']
    #allocation6 [shape = 's32[1]{0}', space=sflag, size = 0x4, scoped, tag = 'scoped memory for tpu_custom_call.1']
    #allocation7 [shape = 'u8[65536]{0}', space=vmem, size = 0x10000, scoped, tag = 'input window, operand 2, single buffered']
    #allocation8 [shape = 'u8[8192]{0}', space=vmem, size = 0x2000, scoped, tag = 'output window, operand 0']
    %8 = vsyncpa [#allocation3], 0
    %s9 = scalar_lea.sflag [#allocation3], 1
    %10 = vsyncpa %s9, 0
    %11 = vsyncpa [#allocation6], 0
    %12 = vsyncpa [#allocation4], 0
    %s13 = scalar_lea.sflag [#allocation4], 1
    %14 = vsyncpa %s13, 0
    loop: start=0, step=1, limit=4
    $region2: #{tpu_custom_call.1} parent=1 // loop_pre_header
      _
    $region3: #{tpu_custom_call.1} parent=1 // loop_header
      %s16 = sphi 0, %s20
      %p17 = scmp.ge.s32.totalorder %s16, 4
      %s26 = sphi 0, %s28
      %s29 = sphi 0, %s26
      %s30 = sphi 0, %s29
      %s46 = sphi 0, %s30
      %s50 = sphi 0, %s50
      %s52 = sphi 0, %s50
      %s53 = sphi 0, %s52
      %s67 = sphi 0, %s53
      %s71 = sphi 0, %s71
      %s73 = sphi 0, %s71
      %s74 = sphi 0, %s73
      %s88 = sphi 0, %s74
      %s94 = sphi 0, %s96
      %s97 = sphi 0, %s94
      %s98 = sphi 0, %s97
      %s114 = sphi 0, %s98
    $region4: #{tpu_custom_call.1} parent=1 // loop_header_branch
      %19 = sbr.rel (%p17) target = $region8
    $region5: #{tpu_custom_call.1} parent=1 // loop_body
      %s21 = ssub.s32 %s16, 1
      %s22 = ssub.s32 %s16, 2
      %s23 = sadd.s32 %s16, 1
      %s24 = ssub.s32 %s16, %s23
      %p25 = scmp.eq.s32.totalorder %s24, 0
      %s27 = sadd.s32 %s26, 1
      %s28 = scalar_select %p25, %s26, %s27
      %p31 = pneg %p25
      %p32 = scmp.eq.s32.totalorder %s16, 1
      %p33 = por %p31, %p32
      %p34 = scmp.ne.s32.totalorder %s26, %s29
      %p35 = scmp.eq.s32.totalorder %s16, 0
      %p36 = por %p34, %p35
      %p37 = scmp.ne.s32.totalorder %s26, %s29
      %p38 = scmp.eq.s32.totalorder %s21, 1
      %p39 = por %p37, %p38
      %p40 = scmp.ne.s32.totalorder %s29, %s30
      %p41 = scmp.eq.s32.totalorder %s21, 0
      %p42 = por %p40, %p41
      %p43 = scmp.ne.s32.totalorder %s29, %s30
      %p44 = scmp.eq.s32.totalorder %s22, 1
      %p45 = por %p43, %p44
      %p47 = scmp.ne.s32.totalorder %s30, %s46
      %p48 = scmp.eq.s32.totalorder %s22, 0
      %p49 = por %p47, %p48
      %s51 = sadd.s32 %s50, 1
      %p54 = scmp.eq.s32.totalorder %s16, 1
      %p55 = scmp.ne.s32.totalorder %s50, %s52
      %p56 = scmp.eq.s32.totalorder %s16, 0
      %p57 = por %p55, %p56
      %p58 = scmp.ne.s32.totalorder %s50, %s52
      %p59 = scmp.eq.s32.totalorder %s21, 1
      %p60 = por %p58, %p59
      %p61 = scmp.ne.s32.totalorder %s52, %s53
      %p62 = scmp.eq.s32.totalorder %s21, 0
      %p63 = por %p61, %p62
      %p64 = scmp.ne.s32.totalorder %s52, %s53
      %p65 = scmp.eq.s32.totalorder %s22, 1
      %p66 = por %p64, %p65
      %p68 = scmp.ne.s32.totalorder %s53, %s67
      %p69 = scmp.eq.s32.totalorder %s22, 0
      %p70 = por %p68, %p69
      %s72 = sadd.s32 %s71, 1
      %p75 = scmp.eq.s32.totalorder %s16, 1
      %p76 = scmp.ne.s32.totalorder %s71, %s73
      %p77 = scmp.eq.s32.totalorder %s16, 0
      %p78 = por %p76, %p77
      %p79 = scmp.ne.s32.totalorder %s71, %s73
      %p80 = scmp.eq.s32.totalorder %s21, 1
      %p81 = por %p79, %p80
      %p82 = scmp.ne.s32.totalorder %s73, %s74
      %p83 = scmp.eq.s32.totalorder %s21, 0
      %p84 = por %p82, %p83
      %p85 = scmp.ne.s32.totalorder %s73, %s74
      %p86 = scmp.eq.s32.totalorder %s22, 1
      %p87 = por %p85, %p86
      %p89 = scmp.ne.s32.totalorder %s74, %s88
      %p90 = scmp.eq.s32.totalorder %s22, 0
      %p91 = por %p89, %p90
      %s92 = ssub.s32 %s16, %s23
      %p93 = scmp.eq.s32.totalorder %s92, 0
      %s95 = sadd.s32 %s94, 1
      %s96 = scalar_select %p93, %s94, %s95
      %p99 = pneg %p93
      %p100 = scmp.eq.s32.totalorder %s16, 1
      %p101 = por %p99, %p100
      %p102 = scmp.ne.s32.totalorder %s94, %s97
      %p103 = scmp.eq.s32.totalorder %s16, 0
      %p104 = por %p102, %p103
      %p105 = scmp.ne.s32.totalorder %s94, %s97
      %p106 = scmp.eq.s32.totalorder %s21, 1
      %p107 = por %p105, %p106
      %p108 = scmp.ne.s32.totalorder %s97, %s98
      %p109 = scmp.eq.s32.totalorder %s21, 0
      %p110 = por %p108, %p109
      %p111 = scmp.ne.s32.totalorder %s97, %s98
      %p112 = scmp.eq.s32.totalorder %s22, 1
      %p113 = por %p111, %p112
      %p115 = scmp.ne.s32.totalorder %s98, %s114
      %p116 = scmp.eq.s32.totalorder %s22, 0
      %p117 = por %p115, %p116
      %p118 = scmp.le.s32.totalorder 1, %s16
      %p119 = scmp.lt.s32.totalorder %s16, 3
      %p120 = pnand %p118, %p119
      %p121 = pneg %p120
      // Predicated region
      $region9: #{tpu_custom_call.1} parent=5 // pred_check
        _
      $region10: #{tpu_custom_call.1} parent=5 // pred_check_branch
        %123 = sbr.rel (%p120) target = $region12
      $region11: #{tpu_custom_call.1} parent=5 // pred_region
        %s124 = ssub.s32 %s16, 1
        // Predicated region
        $region13: #{tpu_custom_call.1} parent=11 // pred_check
          %p125 = pneg %p63
        $region14: #{tpu_custom_call.1} parent=11 // pred_check_branch
          %127 = sbr.rel (%p125) target = $region16
        $region15: #{tpu_custom_call.1} parent=11 // pred_region
          %s129 = ssub.s32 4096, 4096
          %130 = vsyncadd [#allocation6], %s129
          %s131 = sshll.u32 [#allocation5], 4
          %s132 = int_to_ptr.vmem [resolvable:$true] %s131
          %137 = dma.hbm_to_vmem [thread:$0]  %s1, 4096, %s132, [#allocation6], 256, 256, 16
        $region16: #{tpu_custom_call.1} parent=11 // pred_fallthru
          _
        // Predicated region
        $region17: #{tpu_custom_call.1} parent=11 // pred_check
          %p138 = pneg %p84
        $region18: #{tpu_custom_call.1} parent=11 // pred_check_branch
          %140 = sbr.rel (%p138) target = $region20
        $region19: #{tpu_custom_call.1} parent=11 // pred_region
          %s142 = ssub.s32 2048, 2048
          %143 = vsyncadd [#allocation6], %s142
          %s144 = sshll.u32 [#allocation7], 4
          %s145 = int_to_ptr.vmem [resolvable:$true] %s144
          %150 = dma.hbm_to_vmem [thread:$0]  %s2, 2048, %s145, [#allocation6], 64, 64, 4
        $region20: #{tpu_custom_call.1} parent=11 // pred_fallthru
          _
      $region12: #{tpu_custom_call.1} parent=5 // pred_fallthru
        _
      %p151 = scmp.lt.s32.totalorder %s16, 2
      // Predicated region
      $region21: #{tpu_custom_call.1} parent=5 // pred_check
        %p152 = pneg %p151
      $region22: #{tpu_custom_call.1} parent=5 // pred_check_branch
        %154 = sbr.rel (%p152) target = $region24
      $region23: #{tpu_custom_call.1} parent=5 // pred_region
        // Predicated region
        $region25: #{tpu_custom_call.1} parent=23 // pred_check
          %p155 = pneg %p36
        $region26: #{tpu_custom_call.1} parent=23 // pred_check_branch
          %157 = sbr.rel (%p155) target = $region28
        $region27: #{tpu_custom_call.1} parent=23 // pred_region
          %s158 = sand.u32 %s26, 1
          %s159 = scalar_lea.sflag [#allocation3], %s158
          %s160 = sand.u32 %s26, 1
          %s161 = smul.addr %s160, 4
          %s162 = scalar_lea.vmem [#allocation2], %s161
          %s164 = ssub.s32 64, 64
          %165 = vsyncadd %s159, %s164
          %s166 = smul.addr %s16, 64
          %s167 = scalar_lea.hbm %s0, %s166
          %s169 = sshll.u32 %s162, 4
          %s170 = int_to_ptr.vmem [resolvable:$true] %s169
          %172 = dma.hbm_to_vmem [thread:$0]  %s167, 64, %s170, %s159
        $region28: #{tpu_custom_call.1} parent=23 // pred_fallthru
          _
      $region24: #{tpu_custom_call.1} parent=5 // pred_fallthru
        _
      %p173 = scmp.le.s32.totalorder 1, %s16
      %p174 = scmp.lt.s32.totalorder %s16, 3
      %p175 = pnand %p173, %p174
      %p176 = pneg %p175
      // Predicated region
      $region29: #{tpu_custom_call.1} parent=5 // pred_check
        _
      $region30: #{tpu_custom_call.1} parent=5 // pred_check_branch
        %178 = sbr.rel (%p175) target = $region32
      $region31: #{tpu_custom_call.1} parent=5 // pred_region
        %s179 = ssub.s32 %s16, 1
        %s180 = sand.u32 %s29, 1
        %s181 = scalar_lea.sflag [#allocation3], %s180
        %s182 = sand.u32 %s29, 1
        %s183 = smul.addr %s182, 4
        %s184 = scalar_lea.vmem [#allocation2], %s183
        // Predicated region
        $region33: #{tpu_custom_call.1} parent=31 // pred_check
          %p185 = pneg %p42
        $region34: #{tpu_custom_call.1} parent=31 // pred_check_branch
          %187 = sbr.rel (%p185) target = $region36
        $region35: #{tpu_custom_call.1} parent=31 // pred_region
          %188 = dma.done %s181, 64
        $region36: #{tpu_custom_call.1} parent=31 // pred_fallthru
          _
        // Predicated region
        $region37: #{tpu_custom_call.1} parent=31 // pred_check
          %p189 = pneg %p63
        $region38: #{tpu_custom_call.1} parent=31 // pred_check_branch
          %191 = sbr.rel (%p189) target = $region40
        $region39: #{tpu_custom_call.1} parent=31 // pred_region
          %192 = dma.done [#allocation6], 4096
        $region40: #{tpu_custom_call.1} parent=31 // pred_fallthru
          _
        // Predicated region
        $region41: #{tpu_custom_call.1} parent=31 // pred_check
          %p193 = pneg %p84
        $region42: #{tpu_custom_call.1} parent=31 // pred_check_branch
          %195 = sbr.rel (%p193) target = $region44
        $region43: #{tpu_custom_call.1} parent=31 // pred_region
          %196 = dma.done [#allocation6], 2048
        $region44: #{tpu_custom_call.1} parent=31 // pred_fallthru
          _
        %s197 = sand.u32 %s29, 1
        %s198 = scalar_lea.sflag [#allocation3], %s197
        %s199 = sand.u32 %s29, 1
        %s200 = smul.addr %s199, 4
        %s201 = scalar_lea.vmem [#allocation2], %s200
        %p202 = pneg %p42
        %p203 = pneg %p39
        %p204 = pneg %p63
        %p205 = pneg %p60
        %p206 = pneg %p84
        %p207 = pneg %p81
        %p208 = pneg %p110
        %p209 = pneg %p107
        %s210 = sand.u32 %s97, 1
        %s211 = scalar_lea.sflag [#allocation4], %s210
        %s212 = sand.u32 %s97, 1
        %s213 = smul.addr %s212, 8
        %s214 = scalar_lea.vmem [#allocation8], %s213
        %v216 = vld [vmem:[%s184] sm:$0xf]
        %v217 = vld [vmem:[#allocation5] sm:$0xff]
        %v218 = vld [vmem:[#allocation5 + $0x8] sm:$0xff]
        %v219 = vld [vmem:[#allocation5 + $0x10] sm:$0xff]
        %v220 = vld [vmem:[#allocation5 + $0x18] sm:$0xff]
        %v221 = vld [vmem:[#allocation5 + $0x20] sm:$0xff]
        %v222 = vld [vmem:[#allocation5 + $0x28] sm:$0xff]
        %v223 = vld [vmem:[#allocation5 + $0x30] sm:$0xff]
        %v224 = vld [vmem:[#allocation5 + $0x38] sm:$0xff]
        %v225 = vld [vmem:[#allocation5 + $0x40] sm:$0xff]
        %v226 = vld [vmem:[#allocation5 + $0x48] sm:$0xff]
        %v227 = vld [vmem:[#allocation5 + $0x50] sm:$0xff]
        %v228 = vld [vmem:[#allocation5 + $0x58] sm:$0xff]
        %v229 = vld [vmem:[#allocation5 + $0x60] sm:$0xff]
        %v230 = vld [vmem:[#allocation5 + $0x68] sm:$0xff]
        %v231 = vld [vmem:[#allocation5 + $0x70] sm:$0xff]
        %v232 = vld [vmem:[#allocation5 + $0x78] sm:$0xff]
        %v233 = vld [vmem:[#allocation5 + $0x80] sm:$0xff]
        %v234 = vld [vmem:[#allocation5 + $0x88] sm:$0xff]
        %v235 = vld [vmem:[#allocation5 + $0x90] sm:$0xff]
        %v236 = vld [vmem:[#allocation5 + $0x98] sm:$0xff]
        %v237 = vld [vmem:[#allocation5 + $0xa0] sm:$0xff]
        %v238 = vld [vmem:[#allocation5 + $0xa8] sm:$0xff]
        %v239 = vld [vmem:[#allocation5 + $0xb0] sm:$0xff]
        %v240 = vld [vmem:[#allocation5 + $0xb8] sm:$0xff]
        %v241 = vld [vmem:[#allocation5 + $0xc0] sm:$0xff]
        %v242 = vld [vmem:[#allocation5 + $0xc8] sm:$0xff]
        %v243 = vld [vmem:[#allocation5 + $0xd0] sm:$0xff]
        %v244 = vld [vmem:[#allocation5 + $0xd8] sm:$0xff]
        %v245 = vld [vmem:[#allocation5 + $0xe0] sm:$0xff]
        %v246 = vld [vmem:[#allocation5 + $0xe8] sm:$0xff]
        %v247 = vld [vmem:[#allocation5 + $0xf0] sm:$0xff]
        %v248 = vld [vmem:[#allocation5 + $0xf8] sm:$0xff]
        %v281 = vunpack.c.l.b16 %v217
        %v282 = vunpack.c.h.b16 %v217
        %v283 = vunpack.c.l.b16 %v218
        %v284 = vunpack.c.h.b16 %v218
        %v285 = vunpack.c.l.b16 %v219
        %v286 = vunpack.c.h.b16 %v219
        %v287 = vunpack.c.l.b16 %v220
        %v288 = vunpack.c.h.b16 %v220
        %v289 = vunpack.c.l.b16 %v221
        %v290 = vunpack.c.h.b16 %v221
        %v291 = vunpack.c.l.b16 %v222
        %v292 = vunpack.c.h.b16 %v222
        %v293 = vunpack.c.l.b16 %v223
        %v294 = vunpack.c.h.b16 %v223
        %v295 = vunpack.c.l.b16 %v224
        %v296 = vunpack.c.h.b16 %v224
        %v297 = vunpack.c.l.b16 %v225
        %v298 = vunpack.c.h.b16 %v225
        %v299 = vunpack.c.l.b16 %v226
        %v300 = vunpack.c.h.b16 %v226
        %v301 = vunpack.c.l.b16 %v227
        %v302 = vunpack.c.h.b16 %v227
        %v303 = vunpack.c.l.b16 %v228
        %v304 = vunpack.c.h.b16 %v228
        %v305 = vunpack.c.l.b16 %v229
        %v306 = vunpack.c.h.b16 %v229
        %v307 = vunpack.c.l.b16 %v230
        %v308 = vunpack.c.h.b16 %v230
        %v309 = vunpack.c.l.b16 %v231
        %v310 = vunpack.c.h.b16 %v231
        %v311 = vunpack.c.l.b16 %v232
        %v312 = vunpack.c.h.b16 %v232
        %v313 = vunpack.c.l.b16 %v233
        %v314 = vunpack.c.h.b16 %v233
        %v315 = vunpack.c.l.b16 %v234
        %v316 = vunpack.c.h.b16 %v234
        %v317 = vunpack.c.l.b16 %v235
        %v318 = vunpack.c.h.b16 %v235
        %v319 = vunpack.c.l.b16 %v236
        %v320 = vunpack.c.h.b16 %v236
        %v321 = vunpack.c.l.b16 %v237
        %v322 = vunpack.c.h.b16 %v237
        %v323 = vunpack.c.l.b16 %v238
        %v324 = vunpack.c.h.b16 %v238
        %v325 = vunpack.c.l.b16 %v239
        %v326 = vunpack.c.h.b16 %v239
        %v327 = vunpack.c.l.b16 %v240
        %v328 = vunpack.c.h.b16 %v240
        %v329 = vunpack.c.l.b16 %v241
        %v330 = vunpack.c.h.b16 %v241
        %v331 = vunpack.c.l.b16 %v242
        %v332 = vunpack.c.h.b16 %v242
        %v333 = vunpack.c.l.b16 %v243
        %v334 = vunpack.c.h.b16 %v243
        %v335 = vunpack.c.l.b16 %v244
        %v336 = vunpack.c.h.b16 %v244
        %v337 = vunpack.c.l.b16 %v245
        %v338 = vunpack.c.h.b16 %v245
        %v339 = vunpack.c.l.b16 %v246
        %v340 = vunpack.c.h.b16 %v246
        %v341 = vunpack.c.l.b16 %v247
        %v342 = vunpack.c.h.b16 %v247
        %v343 = vunpack.c.l.b16 %v248
        %v344 = vunpack.c.h.b16 %v248
        %v345 = vpack.c.b16 %v285, %v281
        %v346 = vpack.c.b16 %v286, %v282
        %v347 = vpack.c.b16 %v287, %v283
        %v348 = vpack.c.b16 %v288, %v284
        %v349 = vpack.c.b16 %v293, %v289
        %v350 = vpack.c.b16 %v294, %v290
        %v351 = vpack.c.b16 %v295, %v291
        %v352 = vpack.c.b16 %v296, %v292
        %v353 = vpack.c.b16 %v301, %v297
        %v354 = vpack.c.b16 %v302, %v298
        %v355 = vpack.c.b16 %v303, %v299
        %v356 = vpack.c.b16 %v304, %v300
        %v357 = vpack.c.b16 %v309, %v305
        %v358 = vpack.c.b16 %v310, %v306
        %v359 = vpack.c.b16 %v311, %v307
        %v360 = vpack.c.b16 %v312, %v308
        %v361 = vpack.c.b16 %v317, %v313
        %v362 = vpack.c.b16 %v318, %v314
        %v363 = vpack.c.b16 %v319, %v315
        %v364 = vpack.c.b16 %v320, %v316
        %v365 = vpack.c.b16 %v325, %v321
        %v366 = vpack.c.b16 %v326, %v322
        %v367 = vpack.c.b16 %v327, %v323
        %v368 = vpack.c.b16 %v328, %v324
        %v369 = vpack.c.b16 %v333, %v329
        %v370 = vpack.c.b16 %v334, %v330
        %v371 = vpack.c.b16 %v335, %v331
        %v372 = vpack.c.b16 %v336, %v332
        %v373 = vpack.c.b16 %v341, %v337
        %v374 = vpack.c.b16 %v342, %v338
        %v375 = vpack.c.b16 %v343, %v339
        %v376 = vpack.c.b16 %v344, %v340
        %409 = vmatprep.subr.bf16.mxu0 %v346
        %410 = vmatpush1.bf16.msra.mxu0 %v345
        %411 = vmatprep.subr.bf16.mxu0 %v350
        %412 = vmatpush1.bf16.msra.mxu0 %v349
        %413 = vmatprep.subr.bf16.mxu0 %v354
        %414 = vmatpush1.bf16.msra.mxu0 %v353
        %415 = vmatprep.subr.bf16.mxu0 %v358
        %416 = vmatpush1.bf16.msra.mxu0 %v357
        %417 = vmatprep.subr.bf16.mxu0 %v362
        %418 = vmatpush1.bf16.msra.mxu0 %v361
        %419 = vmatprep.subr.bf16.mxu0 %v366
        %420 = vmatpush1.bf16.msra.mxu0 %v365
        %421 = vmatprep.subr.bf16.mxu0 %v370
        %422 = vmatpush1.bf16.msra.mxu0 %v369
        %423 = vmatprep.subr.bf16.mxu0 %v374
        %424 = vmatpush1.bf16.msra.mxu0 %v373
        %425 = vmatprep.subr.bf16.mxu0 0
        %426 = vmatpush1.bf16.msra.mxu0 0
        %427 = vmatprep.subr.bf16.mxu0 0
        %428 = vmatpush1.bf16.msra.mxu0 0
        %429 = vmatprep.subr.bf16.mxu0 0
        %430 = vmatpush1.bf16.msra.mxu0 0
        %431 = vmatprep.subr.bf16.mxu0 0
        %432 = vmatpush1.bf16.msra.mxu0 0
        %433 = vmatprep.subr.bf16.mxu0 0
        %434 = vmatpush1.bf16.msra.mxu0 0
        %435 = vmatprep.subr.bf16.mxu0 0
        %436 = vmatpush1.bf16.msra.mxu0 0
        %437 = vmatprep.subr.bf16.mxu0 0
        %438 = vmatpush1.bf16.msra.mxu0 0
        %439 = vmatprep.subr.bf16.mxu0 0
        %440 = vmatpush1.bf16.msra.mxu0 0
        %441 = vmatprep.mubr.bf16.mxu0 0
        %442 = vmatmul.mubr.bf16.gmra.mrb[0].mxu0 %v216
        %v443 = vpop.f32.mrb[0].mxu0
        %v444 = vadd.f32 0.0, %v443
        %v445 = vpop.f32.mrb[0].mxu0
        %v446 = vadd.f32 0.0, %v445
        %v447 = vpop.f32.mrb[0].mxu0
        %v448 = vpop.f32.mrb[0].mxu0
        %449 = vdwg.mxu0
        %450 = vmatprep.subr.bf16.mxu0 %v348
        %451 = vmatpush1.bf16.msra.mxu0 %v347
        %452 = vmatprep.subr.bf16.mxu0 %v352
        %453 = vmatpush1.bf16.msra.mxu0 %v351
        %454 = vmatprep.subr.bf16.mxu0 %v356
        %455 = vmatpush1.bf16.msra.mxu0 %v355
        %456 = vmatprep.subr.bf16.mxu0 %v360
        %457 = vmatpush1.bf16.msra.mxu0 %v359
        %458 = vmatprep.subr.bf16.mxu0 %v364
        %459 = vmatpush1.bf16.msra.mxu0 %v363
        %460 = vmatprep.subr.bf16.mxu0 %v368
        %461 = vmatpush1.bf16.msra.mxu0 %v367
        %462 = vmatprep.subr.bf16.mxu0 %v372
        %463 = vmatpush1.bf16.msra.mxu0 %v371
        %464 = vmatprep.subr.bf16.mxu0 %v376
        %465 = vmatpush1.bf16.msra.mxu0 %v375
        %466 = vmatprep.subr.bf16.mxu0 0
        %467 = vmatpush1.bf16.msra.mxu0 0
        %468 = vmatprep.subr.bf16.mxu0 0
        %469 = vmatpush1.bf16.msra.mxu0 0
        %470 = vmatprep.subr.bf16.mxu0 0
        %471 = vmatpush1.bf16.msra.mxu0 0
        %472 = vmatprep.subr.bf16.mxu0 0
        %473 = vmatpush1.bf16.msra.mxu0 0
        %474 = vmatprep.subr.bf16.mxu0 0
        %475 = vmatpush1.bf16.msra.mxu0 0
        %476 = vmatprep.subr.bf16.mxu0 0
        %477 = vmatpush1.bf16.msra.mxu0 0
        %478 = vmatprep.subr.bf16.mxu0 0
        %479 = vmatpush1.bf16.msra.mxu0 0
        %480 = vmatprep.subr.bf16.mxu0 0
        %481 = vmatpush1.bf16.msra.mxu0 0
        %482 = vmatprep.mubr.bf16.mxu0 0
        %483 = vmatmul.mubr.bf16.gmra.mrb[0].mxu0 %v216
        %v484 = vpop.f32.mrb[0].mxu0
        %v485 = vadd.f32 0.0, %v484
        %v486 = vpop.f32.mrb[0].mxu0
        %v487 = vadd.f32 0.0, %v486
        %v488 = vpop.f32.mrb[0].mxu0
        %v489 = vpop.f32.mrb[0].mxu0
        %490 = vdwg.mxu0
        %v491 = vxor.u32 %v444, 2147483648
        %v492 = vxor.u32 %v446, 2147483648
        %v493 = vmul.f32 %v491, 1.442695
        %v494 = vpow.pop %v493
        %v495 = vmul.f32 %v492, 1.442695
        %v496 = vpow.pop %v495
        %v497 = vadd.f32 %v494, 1.0
        %v498 = vadd.f32 %v496, 1.0
        %v499 = vrcp.pop %v497
        %v500 = vmul.f32 1.0, %v499
        %v501 = vrcp.pop %v498
        %v502 = vmul.f32 1.0, %v501
        %v503 = vmul.f32 %v444, %v500
        %v504 = vmul.f32 %v446, %v502
        %v505 = vmul.f32 %v503, %v485
        %v506 = vmul.f32 %v504, %v487
        %v507 = vpack.c.bf16 %v505, %v505
        %v508 = vpack.c.bf16 %v506, %v506
        %v509 = vld [vmem:[#allocation7] sm:$0xf]
        %v510 = vld [vmem:[#allocation7 + $0x4] sm:$0xf]
        %v511 = vld [vmem:[#allocation7 + $0x8] sm:$0xf]
        %v512 = vld [vmem:[#allocation7 + $0xc] sm:$0xf]
        %v513 = vld [vmem:[#allocation7 + $0x10] sm:$0xf]
        %v514 = vld [vmem:[#allocation7 + $0x14] sm:$0xf]
        %v515 = vld [vmem:[#allocation7 + $0x18] sm:$0xf]
        %v516 = vld [vmem:[#allocation7 + $0x1c] sm:$0xf]
        %v517 = vld [vmem:[#allocation7 + $0x20] sm:$0xf]
        %v518 = vld [vmem:[#allocation7 + $0x24] sm:$0xf]
        %v519 = vld [vmem:[#allocation7 + $0x28] sm:$0xf]
        %v520 = vld [vmem:[#allocation7 + $0x2c] sm:$0xf]
        %v521 = vld [vmem:[#allocation7 + $0x30] sm:$0xf]
        %v522 = vld [vmem:[#allocation7 + $0x34] sm:$0xf]
        %v523 = vld [vmem:[#allocation7 + $0x38] sm:$0xf]
        %v524 = vld [vmem:[#allocation7 + $0x3c] sm:$0xf]
        %v525 = vld [vmem:[#allocation7 + $0x40] sm:$0xf]
        %v526 = vld [vmem:[#allocation7 + $0x44] sm:$0xf]
        %v527 = vld [vmem:[#allocation7 + $0x48] sm:$0xf]
        %v528 = vld [vmem:[#allocation7 + $0x4c] sm:$0xf]
        %v529 = vld [vmem:[#allocation7 + $0x50] sm:$0xf]
        %v530 = vld [vmem:[#allocation7 + $0x54] sm:$0xf]
        %v531 = vld [vmem:[#allocation7 + $0x58] sm:$0xf]
        %v532 = vld [vmem:[#allocation7 + $0x5c] sm:$0xf]
        %v533 = vld [vmem:[#allocation7 + $0x60] sm:$0xf]
        %v534 = vld [vmem:[#allocation7 + $0x64] sm:$0xf]
        %v535 = vld [vmem:[#allocation7 + $0x68] sm:$0xf]
        %v536 = vld [vmem:[#allocation7 + $0x6c] sm:$0xf]
        %v537 = vld [vmem:[#allocation7 + $0x70] sm:$0xf]
        %v538 = vld [vmem:[#allocation7 + $0x74] sm:$0xf]
        %v539 = vld [vmem:[#allocation7 + $0x78] sm:$0xf]
        %v540 = vld [vmem:[#allocation7 + $0x7c] sm:$0xf]
        %v573 = vunpack.c.l.b16 %v509
        %v574 = vunpack.c.l.b16 %v510
        %v575 = vunpack.c.l.b16 %v511
        %v576 = vunpack.c.l.b16 %v512
        %v577 = vunpack.c.l.b16 %v513
        %v578 = vunpack.c.l.b16 %v514
        %v579 = vunpack.c.l.b16 %v515
        %v580 = vunpack.c.l.b16 %v516
        %v581 = vunpack.c.l.b16 %v517
        %v582 = vunpack.c.l.b16 %v518
        %v583 = vunpack.c.l.b16 %v519
        %v584 = vunpack.c.l.b16 %v520
        %v585 = vunpack.c.l.b16 %v521
        %v586 = vunpack.c.l.b16 %v522
        %v587 = vunpack.c.l.b16 %v523
        %v588 = vunpack.c.l.b16 %v524
        %v589 = vunpack.c.l.b16 %v525
        %v590 = vunpack.c.l.b16 %v526
        %v591 = vunpack.c.l.b16 %v527
        %v592 = vunpack.c.l.b16 %v528
        %v593 = vunpack.c.l.b16 %v529
        %v594 = vunpack.c.l.b16 %v530
        %v595 = vunpack.c.l.b16 %v531
        %v596 = vunpack.c.l.b16 %v532
        %v597 = vunpack.c.l.b16 %v533
        %v598 = vunpack.c.l.b16 %v534
        %v599 = vunpack.c.l.b16 %v535
        %v600 = vunpack.c.l.b16 %v536
        %v601 = vunpack.c.l.b16 %v537
        %v602 = vunpack.c.l.b16 %v538
        %v603 = vunpack.c.l.b16 %v539
        %v604 = vunpack.c.l.b16 %v540
        %v605 = vpack.c.b16 %v574, %v573
        %v606 = vpack.c.b16 %v576, %v575
        %v607 = vpack.c.b16 %v578, %v577
        %v608 = vpack.c.b16 %v580, %v579
        %v609 = vpack.c.b16 %v582, %v581
        %v610 = vpack.c.b16 %v584, %v583
        %v611 = vpack.c.b16 %v586, %v585
        %v612 = vpack.c.b16 %v588, %v587
        %v613 = vpack.c.b16 %v590, %v589
        %v614 = vpack.c.b16 %v592, %v591
        %v615 = vpack.c.b16 %v594, %v593
        %v616 = vpack.c.b16 %v596, %v595
        %v617 = vpack.c.b16 %v598, %v597
        %v618 = vpack.c.b16 %v600, %v599
        %v619 = vpack.c.b16 %v602, %v601
        %v620 = vpack.c.b16 %v604, %v603
        %637 = vmatprep.subr.bf16.mxu0 0
        %638 = vmatpush1.bf16.msra.mxu0 %v605
        %639 = vmatprep.subr.bf16.mxu0 0
        %640 = vmatpush1.bf16.msra.mxu0 %v606
        %641 = vmatprep.subr.bf16.mxu0 0
        %642 = vmatpush1.bf16.msra.mxu0 %v607
        %643 = vmatprep.subr.bf16.mxu0 0
        %644 = vmatpush1.bf16.msra.mxu0 %v608
        %645 = vmatprep.subr.bf16.mxu0 0
        %646 = vmatpush1.bf16.msra.mxu0 %v609
        %647 = vmatprep.subr.bf16.mxu0 0
        %648 = vmatpush1.bf16.msra.mxu0 %v610
        %649 = vmatprep.subr.bf16.mxu0 0
        %650 = vmatpush1.bf16.msra.mxu0 %v611
        %651 = vmatprep.subr.bf16.mxu0 0
        %652 = vmatpush1.bf16.msra.mxu0 %v612
        %653 = vmatprep.subr.bf16.mxu0 0
        %654 = vmatpush1.bf16.msra.mxu0 %v613
        %655 = vmatprep.subr.bf16.mxu0 0
        %656 = vmatpush1.bf16.msra.mxu0 %v614
        %657 = vmatprep.subr.bf16.mxu0 0
        %658 = vmatpush1.bf16.msra.mxu0 %v615
        %659 = vmatprep.subr.bf16.mxu0 0
        %660 = vmatpush1.bf16.msra.mxu0 %v616
        %661 = vmatprep.subr.bf16.mxu0 0
        %662 = vmatpush1.bf16.msra.mxu0 %v617
        %663 = vmatprep.subr.bf16.mxu0 0
        %664 = vmatpush1.bf16.msra.mxu0 %v618
        %665 = vmatprep.subr.bf16.mxu0 0
        %666 = vmatpush1.bf16.msra.mxu0 %v619
        %667 = vmatprep.subr.bf16.mxu0 0
        %668 = vmatpush1.bf16.msra.mxu0 %v620
        %669 = vmatprep.mubr.bf16.mxu0 %v508
        %670 = vmatmul.mubr.bf16.gmra.mrb[0].mxu0 %v507
        %v671 = vpop.f32.mrb[0].mxu0
        %v672 = vadd.f32 0.0, %v671
        %v673 = vpop.f32.mrb[0].mxu0
        %v674 = vpop.f32.mrb[0].mxu0
        %v675 = vpop.f32.mrb[0].mxu0
        %676 = vdwg.mxu0
        %677 = vst [vmem:[%s214] sm:$0xff] %v672
        %s678 = sand.u32 %s97, 1
        %s679 = scalar_lea.sflag [#allocation4], %s678
        %s680 = sand.u32 %s97, 1
        %s681 = smul.addr %s680, 8
        %s682 = scalar_lea.vmem [#allocation8], %s681
        // Predicated region
        $region45: #{tpu_custom_call.1} parent=31 // pred_check
          %p683 = pneg %p107
        $region46: #{tpu_custom_call.1} parent=31 // pred_check_branch
          %685 = sbr.rel (%p683) target = $region48
        $region47: #{tpu_custom_call.1} parent=31 // pred_region
          %s687 = ssub.s32 128, 128
          %688 = vsyncadd %s679, %s687
          %s689 = smul.addr %s21, 128
          %s690 = scalar_lea.hbm %s3, %s689
          %s692 = sshll.u32 %s682, 4
          %s693 = int_to_ptr.vmem [resolvable:$true] %s692
          %695 = dma.vmem_to_hbm [thread:$0]  %s693, 128, %s690, %s679
        $region48: #{tpu_custom_call.1} parent=31 // pred_fallthru
          _
      $region32: #{tpu_custom_call.1} parent=5 // pred_fallthru
        _
      %p696 = scmp.le.s32.totalorder 2, %s16
      // Predicated region
      $region49: #{tpu_custom_call.1} parent=5 // pred_check
        %p697 = pneg %p696
      $region50: #{tpu_custom_call.1} parent=5 // pred_check_branch
        %699 = sbr.rel (%p697) target = $region52
      $region51: #{tpu_custom_call.1} parent=5 // pred_region
        %s700 = ssub.s32 %s16, 2
        // Predicated region
        $region53: #{tpu_custom_call.1} parent=51 // pred_check
          %p701 = pneg %p113
        $region54: #{tpu_custom_call.1} parent=51 // pred_check_branch
          %703 = sbr.rel (%p701) target = $region56
        $region55: #{tpu_custom_call.1} parent=51 // pred_region
          %s704 = sand.u32 %s98, 1
          %s705 = scalar_lea.sflag [#allocation4], %s704
          %s706 = sand.u32 %s98, 1
          %s707 = smul.addr %s706, 8
          %s708 = scalar_lea.vmem [#allocation8], %s707
          %709 = dma.done %s705, 128
        $region56: #{tpu_custom_call.1} parent=51 // pred_fallthru
          _
      $region52: #{tpu_custom_call.1} parent=5 // pred_fallthru
        _
    $region6: #{tpu_custom_call.1} parent=1 // loop_footer
      %s20 = sadd.s32 1, %s16
    $region7: #{tpu_custom_call.1} parent=1 // loop_footer_branch
      %15 = sbr.rel target = $region3
    $region8: #{tpu_custom_call.1} parent=1 // loop_exit
      _
    %710 = vsyncpa [#allocation3], 1
    %s711 = scalar_lea.sflag [#allocation3], 1
    %712 = vsyncpa %s711, 1
    %713 = vsyncpa [#allocation6], 1
    %714 = vsyncpa [#allocation4], 1
    %s715 = scalar_lea.sflag [#allocation4], 1
    %716 = vsyncpa %s715, 1

</llo_original>
